<compile_context>
chip_gen: v7x
topology: tpu7x:2x2x1
jax: 0.10.0
libtpu: 0.0.40
codegen_flags: <defaults>
</compile_context>

<pallas_src>
import functools

import jax
import jax.numpy as jnp
from jax.experimental import pallas as pl
from jax.experimental.pallas import tpu as pltpu

DEFAULT_MARGIN = 5.0           # module default (alpha/beta unused in forward)
_MAX_BATCH_TILE = 512          # rows: ~85% of HBM roofline for mem-bound tiles
_VMEM_TILE_BUDGET = 48 << 20   # double-buffered input working-set budget


def _sublane_multiple(itemsize: int) -> int:
    return {1: 32, 2: 16}.get(itemsize, 8)


def _choose_batch_tile(batch: int, dim: int, itemsize: int) -> int:
    if batch <= _MAX_BATCH_TILE:
        return batch                       # single full-batch tile (full-dim block)
    sub = _sublane_multiple(itemsize)
    per_row = 3 * 2 * dim * itemsize       # 3 inputs, double-buffered
    tb = min(_MAX_BATCH_TILE, max(sub, _VMEM_TILE_BUDGET // per_row))
    return max((tb // sub) * sub, sub)


def _triplet_kernel(a_ref, p_ref, n_ref, o_ref, acc_ref, *,
                    batch, tile_rows, tiles_per_core, margin):
    c = pl.program_id(0)     # core chunk ("parallel")
    t = pl.program_id(1)     # batch tile within the chunk ("arbitrary")

    @pl.when(t == 0)
    def _init():
        acc_ref[...] = jnp.zeros_like(acc_ref)

    a = a_ref[...].astype(jnp.float32)
    p = p_ref[...].astype(jnp.float32)
    n = n_ref[...].astype(jnp.float32)

    dp_pos = jnp.sum(a * p, axis=1, keepdims=True)      # (TB, 1)
    dp_neg = jnp.sum(a * n, axis=1, keepdims=True)      # (TB, 1)
    losses = jnp.maximum(-dp_pos + jnp.abs(dp_neg) + margin, 0.0)

    # Mask rows past the true batch (block padding of the last partial tile
    # and any redundant clamped tile on the second core).
    row_start = (c * tiles_per_core + t) * tile_rows
    row_ids = jax.lax.broadcasted_iota(jnp.int32, losses.shape, 0) + row_start
    losses = jnp.where(row_ids < batch, losses, 0.0)

    acc_ref[...] = acc_ref[...] + jnp.sum(losses, axis=0, keepdims=True)

    @pl.when(t == pl.num_programs(1) - 1)
    def _finalize():
        # Lane-dense (8,128) output block; partial sum broadcast so the
        # wrapper can read element [0, 0] of each core's block.
        o_ref[...] = jnp.broadcast_to(acc_ref[...], o_ref.shape)


def triplet_loss_hamming_constraint(anchor, positive, negative,
                                    margin=DEFAULT_MARGIN):
    """anchor/positive/negative: (B, D) arrays (f32/bf16). Returns f32 scalar."""
    B, D = anchor.shape
    itemsize = anchor.dtype.itemsize
    TB = _choose_batch_tile(B, D, itemsize)
    total_tiles = pl.cdiv(B, TB)
    num_cores = 2 if total_tiles >= 2 else 1      # v7x: use both TensorCores
    tiles_per_core = pl.cdiv(total_tiles, num_cores)

    def in_map(c, t):
        # Clamp so a redundant tile on the last core never indexes OOB;
        # its rows are masked out inside the kernel.
        return (jnp.minimum(c * tiles_per_core + t, total_tiles - 1), 0)

    kernel = functools.partial(
        _triplet_kernel, batch=B, tile_rows=TB,
        tiles_per_core=tiles_per_core, margin=float(margin))

    working_bytes = 3 * 2 * TB * D * itemsize + (4 << 20)
    vmem_limit = int(min(max(working_bytes, 32 << 20), 56 << 20))

    out = pl.pallas_call(
        kernel,
        out_shape=jax.ShapeDtypeStruct((num_cores * 8, 128), jnp.float32),
        grid=(num_cores, tiles_per_core),
        in_specs=[
            pl.BlockSpec((TB, D), in_map),
            pl.BlockSpec((TB, D), in_map),
            pl.BlockSpec((TB, D), in_map),
        ],
        out_specs=pl.BlockSpec((8, 128), lambda c, t: (c, 0)),
        scratch_shapes=[pltpu.VMEM((1, 1), jnp.float32)],
        compiler_params=pltpu.CompilerParams(
            dimension_semantics=("parallel", "arbitrary"),
            vmem_limit_bytes=vmem_limit,
        ),
    )(anchor, positive, negative)

    partial_sums = out[0::8, 0]                   # one partial sum per core chunk
    return jnp.sum(partial_sums) / B


def _reference(anchor, positive, negative, margin=DEFAULT_MARGIN):
    a = anchor.astype(jnp.float32)
    p = positive.astype(jnp.float32)
    n = negative.astype(jnp.float32)
    dp_pos = jnp.sum(a * p, axis=1)
    dp_neg = jnp.sum(a * n, axis=1)
    losses = jnp.maximum(-dp_pos + jnp.abs(dp_neg) + margin, 0.0)
    return jnp.mean(losses)


def _make_codes(key, shape):
    # Hamming-style +/-1 codes; exactly representable in bf16 -> halves HBM bytes.
    return jnp.sign(jax.random.normal(key, shape, dtype=jnp.float32)).astype(jnp.bfloat16)


if __name__ == "__main__":
    keys = jax.random.split(jax.random.PRNGKey(0), 6)

    # Case 1: small single-tile path (B=8, D=128).
    a1, p1, n1 = (_make_codes(keys[i], (8, 128)) for i in range(3))
    out1 = jax.block_until_ready(triplet_loss_hamming_constraint(a1, p1, n1))
    ref1 = _reference(a1, p1, n1)
    assert jnp.allclose(out1, ref1, rtol=1e-5, atol=1e-5), (out1, ref1)

    # Case 2: exercises batch tiling, last-tile masking and the 2-chunk split
    # (B=600 is not a multiple of the 512-row tile).
    a2, p2, n2 = (_make_codes(keys[3 + i], (600, 256)) for i in range(3))
    out2 = jax.block_until_ready(triplet_loss_hamming_constraint(a2, p2, n2))
    ref2 = _reference(a2, p2, n2)
    assert jnp.allclose(out2, ref2, rtol=1e-5, atol=1e-5), (out2, ref2)

    print("KERNEL_OK")
</pallas_src>

<mosaic_0001>
module attributes {stable_mosaic.version = 11 : i64} {
  func.func @_triplet_kernel(%arg0: i32, %arg1: i32, %arg2: memref<8x128xbf16, #tpu.memory_space<vmem>>, %arg3: memref<8x128xbf16, #tpu.memory_space<vmem>>, %arg4: memref<8x128xbf16, #tpu.memory_space<vmem>>, %arg5: memref<8x128xf32, #tpu.memory_space<vmem>>, %arg6: memref<1x1xf32, #tpu.memory_space<vmem>>) attributes {dimension_semantics = [#tpu.dimension_semantics<parallel>, #tpu.dimension_semantics<arbitrary>], iteration_bounds = array<i64: 1, 1>, scalar_prefetch = 0 : i64, scratch_operands = 1 : i64, tpu.core_type = #tpu.core_type<tc>, window_params = [{transform_indices = @transform_0, window_bounds = array<i64: 8, 128>}, {transform_indices = @transform_1, window_bounds = array<i64: 8, 128>}, {transform_indices = @transform_2, window_bounds = array<i64: 8, 128>}, {transform_indices = @transform_3, window_bounds = array<i64: 8, 128>}]} {
    %c0_i32 = arith.constant 0 : i32
    %0 = arith.cmpi eq, %arg1, %c0_i32 : i32
    %1 = arith.extui %0 : i1 to i32
    %c0_i32_0 = arith.constant 0 : i32
    %2 = arith.cmpi ne, %1, %c0_i32_0 : i32
    scf.if %2 {
      %cst_19 = arith.constant 0.000000e+00 : f32
      %41 = vector.broadcast %cst_19 : f32 to vector<1x1xf32>
      %c0_20 = arith.constant 0 : index
      %c0_21 = arith.constant 0 : index
      %42 = vector.load %arg6[%c0_20, %c0_21] : memref<1x1xf32, #tpu.memory_space<vmem>>, vector<1x1xf32>
      tpu.vector_store %arg6[%c0_20, %c0_21], %41 {strides = array<i32>} : memref<1x1xf32, #tpu.memory_space<vmem>>, vector<1x1xf32>,
    } else {
    }
    %c0 = arith.constant 0 : index
    %c0_1 = arith.constant 0 : index
    %3 = vector.load %arg2[%c0, %c0_1] : memref<8x128xbf16, #tpu.memory_space<vmem>>, vector<8x128xbf16>
    %4 = arith.extf %3 : vector<8x128xbf16> to vector<8x128xf32>
    %c0_2 = arith.constant 0 : index
    %c0_3 = arith.constant 0 : index
    %5 = vector.load %arg3[%c0_2, %c0_3] : memref<8x128xbf16, #tpu.memory_space<vmem>>, vector<8x128xbf16>
    %6 = arith.extf %5 : vector<8x128xbf16> to vector<8x128xf32>
    %c0_4 = arith.constant 0 : index
    %c0_5 = arith.constant 0 : index
    %7 = vector.load %arg4[%c0_4, %c0_5] : memref<8x128xbf16, #tpu.memory_space<vmem>>, vector<8x128xbf16>
    %8 = arith.extf %7 : vector<8x128xbf16> to vector<8x128xf32>
    %9 = arith.mulf %4, %6 : vector<8x128xf32>
    %cst = arith.constant dense<0.000000e+00> : vector<8xf32>
    %10 = vector.multi_reduction <add>, %9, %cst [1] : vector<8x128xf32> to vector<8xf32>
    %11 = vector.shape_cast %10 : vector<8xf32> to vector<8x1xf32>
    %12 = arith.mulf %4, %8 : vector<8x128xf32>
    %cst_6 = arith.constant dense<0.000000e+00> : vector<8xf32>
    %13 = vector.multi_reduction <add>, %12, %cst_6 [1] : vector<8x128xf32> to vector<8xf32>
    %14 = vector.shape_cast %13 : vector<8xf32> to vector<8x1xf32>
    %cst_7 = arith.constant 0.000000e+00 : f32
    %15 = vector.broadcast %cst_7 : f32 to vector<8x1xf32>
    %16 = arith.subf %15, %11 : vector<8x1xf32>
    %17 = math.absf %14 : vector<8x1xf32>
    %18 = arith.addf %16, %17 : vector<8x1xf32>
    %cst_8 = arith.constant 5.000000e+00 : f32
    %19 = vector.broadcast %cst_8 : f32 to vector<8x1xf32>
    %20 = arith.addf %18, %19 : vector<8x1xf32>
    %cst_9 = arith.constant 0.000000e+00 : f32
    %21 = vector.broadcast %cst_9 : f32 to vector<8x1xf32>
    %22 = arith.maximumf %20, %21 : vector<8x1xf32>
    %c1_i32 = arith.constant 1 : i32
    %23 = arith.muli %arg0, %c1_i32 : i32
    %24 = arith.addi %23, %arg1 : i32
    %c8_i32 = arith.constant 8 : i32
    %25 = arith.muli %24, %c8_i32 : i32
    %26 = tpu.iota {dimensions = array<i32: 0>} : vector<8x1xi32>
    %27 = vector.broadcast %25 : i32 to vector<8x1xi32>
    %28 = arith.addi %26, %27 : vector<8x1xi32>
    %c8_i32_10 = arith.constant 8 : i32
    %29 = vector.broadcast %c8_i32_10 : i32 to vector<8x1xi32>
    %30 = arith.cmpi slt, %28, %29 : vector<8x1xi32>
    %cst_11 = arith.constant 0.000000e+00 : f32
    %31 = vector.broadcast %cst_11 : f32 to vector<8x1xf32>
    %32 = arith.select %30, %22, %31 : vector<8x1xi1>, vector<8x1xf32>
    %c0_12 = arith.constant 0 : index
    %c0_13 = arith.constant 0 : index
    %33 = vector.load %arg6[%c0_12, %c0_13] : memref<1x1xf32, #tpu.memory_space<vmem>>, vector<1x1xf32>
    %cst_14 = arith.constant dense<0.000000e+00> : vector<1xf32>
    %34 = vector.multi_reduction <add>, %32, %cst_14 [0] : vector<8x1xf32> to vector<1xf32>
    %35 = vector.shape_cast %34 : vector<1xf32> to vector<1x1xf32>
    %36 = arith.addf %33, %35 : vector<1x1xf32>
    %c0_15 = arith.constant 0 : index
    %c0_16 = arith.constant 0 : index
    %37 = vector.load %arg6[%c0_15, %c0_16] : memref<1x1xf32, #tpu.memory_space<vmem>>, vector<1x1xf32>
    tpu.vector_store %arg6[%c0_15, %c0_16], %36 {strides = array<i32>} : memref<1x1xf32, #tpu.memory_space<vmem>>, vector<1x1xf32>,
    %c0_i32_17 = arith.constant 0 : i32
    %38 = arith.cmpi eq, %arg1, %c0_i32_17 : i32
    %39 = arith.extui %38 : i1 to i32
    %c0_i32_18 = arith.constant 0 : i32
    %40 = arith.cmpi ne, %39, %c0_i32_18 : i32
    scf.if %40 {
      %c0_19 = arith.constant 0 : index
      %c0_20 = arith.constant 0 : index
      %41 = vector.load %arg6[%c0_19, %c0_20] : memref<1x1xf32, #tpu.memory_space<vmem>>, vector<1x1xf32>
      %42 = vector.shape_cast %41 : vector<1x1xf32> to vector<1x1xf32>
      %43 = vector.broadcast %42 : vector<1x1xf32> to vector<8x128xf32>
      %c0_21 = arith.constant 0 : index
      %c0_22 = arith.constant 0 : index
      %44 = vector.load %arg5[%c0_21, %c0_22] : memref<8x128xf32, #tpu.memory_space<vmem>>, vector<8x128xf32>
      tpu.vector_store %arg5[%c0_21, %c0_22], %43 {strides = array<i32>} : memref<8x128xf32, #tpu.memory_space<vmem>>, vector<8x128xf32>,
    } else {
    }
    return
  }
  func.func @transform_0(%arg0: i32, %arg1: i32) -> (i32, i32) {
    %c1_i32 = arith.constant 1 : i32
    %0 = arith.muli %arg0, %c1_i32 : i32
    %1 = arith.addi %0, %arg1 : i32
    %c0_i32 = arith.constant 0 : i32
    %2 = arith.minsi %1, %c0_i32 : i32
    %c0_i32_0 = arith.constant 0 : i32
    %c0_i32_1 = arith.constant 0 : i32
    return %2, %c0_i32_0 : i32, i32
  }
  func.func @transform_1(%arg0: i32, %arg1: i32) -> (i32, i32) {
    %c1_i32 = arith.constant 1 : i32
    %0 = arith.muli %arg0, %c1_i32 : i32
    %1 = arith.addi %0, %arg1 : i32
    %c0_i32 = arith.constant 0 : i32
    %2 = arith.minsi %1, %c0_i32 : i32
    %c0_i32_0 = arith.constant 0 : i32
    %c0_i32_1 = arith.constant 0 : i32
    return %2, %c0_i32_0 : i32, i32
  }
  func.func @transform_2(%arg0: i32, %arg1: i32) -> (i32, i32) {
    %c1_i32 = arith.constant 1 : i32
    %0 = arith.muli %arg0, %c1_i32 : i32
    %1 = arith.addi %0, %arg1 : i32
    %c0_i32 = arith.constant 0 : i32
    %2 = arith.minsi %1, %c0_i32 : i32
    %c0_i32_0 = arith.constant 0 : i32
    %c0_i32_1 = arith.constant 0 : i32
    return %2, %c0_i32_0 : i32, i32
  }
  func.func @transform_3(%arg0: i32, %arg1: i32) -> (i32, i32) {
    %c0_i32 = arith.constant 0 : i32
    %c0_i32_0 = arith.constant 0 : i32
    return %arg0, %c0_i32 : i32, i32
  }
}

</mosaic_0001>

<llo_original>
// kernel: tpu_custom_call.1
$region0: #{tpu_custom_call.1}
  #allocation0 [shape = 'u32[]', space=smem, size = 0x4, offset = 0x4, fixed_abs, tag = 'smem constant byte address 0x4 - core index']
  #allocation1 [shape = 'u32[144,128]{1,0:T(1,128)}', space=vmem, size = 0x12000, scoped, tag = 'internal scratch']
  #allocation2 [shape = 'f32[1,1]{1,0:T(1,128)}', space=vmem, size = 0x200, scoped, tag = 'scratch operand']
  %s0 = inlined_call_operand.hbm [shape: bf16[8,128], index: 0, kind: input, shape index: {}]
  %s1 = inlined_call_operand.hbm [shape: bf16[8,128], index: 1, kind: input, shape index: {}]
  %s2 = inlined_call_operand.vmem [shape: bf16[8,128], index: 2, kind: input, shape index: {}]
  %s3 = inlined_call_operand.hbm [shape: f32[8,128], index: 3, kind: output, shape index: {}]
  %s4 = sld [smem:[#allocation0]]
  $region38: #{tpu_custom_call.1} parent=0
    _
  %s6 = ssub.s32 1, %s4
  %s7 = scalar_select 0, %s6, %s4
  $region1: #{tpu_custom_call.1} parent=0
    #allocation3 [shape = 'u8[2048]{0}', space=vmem, size = 0x800, scoped, tag = 'input window, operand 0, single buffered']
    #allocation4 [shape = 's32[1]{0}', space=sflag, size = 0x4, scoped, tag = 'scoped memory for tpu_custom_call.1']
    #allocation5 [shape = 's32[1]{0}', space=sflag, size = 0x4, scoped, tag = 'scoped memory for tpu_custom_call.1']
    #allocation6 [shape = 'u8[2048]{0}', space=vmem, size = 0x800, scoped, tag = 'input window, operand 1, single buffered']
    #allocation7 [shape = 's32[1]{0}', space=sflag, size = 0x4, scoped, tag = 'scoped memory for tpu_custom_call.1']
    #allocation8 [shape = 'u8[4096]{0}', space=vmem, size = 0x1000, scoped, tag = 'output window, operand 0, single buffered']
    %8 = vsyncpa [#allocation4], 0
    %9 = vsyncpa [#allocation7], 0
    %10 = vsyncpa [#allocation5], 0
    // Predicated region
    $region2: #{tpu_custom_call.1} parent=1 // pred_check
      _
    $region3: #{tpu_custom_call.1} parent=1 // pred_check_branch
      %12 = sbr.rel (0) target = $region5
    $region4: #{tpu_custom_call.1} parent=1 // pred_region
      %s13 = sadd.s32 0, 0
      %p14 = scmp.lt.s32.totalorder %s13, 0
      %s15 = scalar_select %p14, %s13, 0
      %s17 = ssub.s32 64, 64
      %18 = vsyncadd [#allocation4], %s17
      %s19 = smul.addr %s15, 64
      %s20 = scalar_lea.hbm %s0, %s19
      %s22 = sshll.u32 [#allocation3], 4
      %s23 = int_to_ptr.vmem [resolvable:$true] %s22
      %25 = dma.hbm_to_vmem [thread:$0]  %s20, 64, %s23, [#allocation4]
    $region5: #{tpu_custom_call.1} parent=1 // pred_fallthru
      _
    // Predicated region
    $region6: #{tpu_custom_call.1} parent=1 // pred_check
      _
    $region7: #{tpu_custom_call.1} parent=1 // pred_check_branch
      %27 = sbr.rel (0) target = $region9
    $region8: #{tpu_custom_call.1} parent=1 // pred_region
      %s28 = sadd.s32 0, 0
      %p29 = scmp.lt.s32.totalorder %s28, 0
      %s30 = scalar_select %p29, %s28, 0
      %s32 = ssub.s32 64, 64
      %33 = vsyncadd [#allocation7], %s32
      %s34 = smul.addr %s30, 64
      %s35 = scalar_lea.hbm %s1, %s34
      %s37 = sshll.u32 [#allocation6], 4
      %s38 = int_to_ptr.vmem [resolvable:$true] %s37
      %40 = dma.hbm_to_vmem [thread:$0]  %s35, 64, %s38, [#allocation7]
    $region9: #{tpu_custom_call.1} parent=1 // pred_fallthru
      _
    // Predicated region
    $region10: #{tpu_custom_call.1} parent=1 // pred_check
      _
    $region11: #{tpu_custom_call.1} parent=1 // pred_check_branch
      %42 = sbr.rel (0) target = $region13
    $region12: #{tpu_custom_call.1} parent=1 // pred_region
      %s43 = sadd.s32 0, 0
      %p44 = scmp.lt.s32.totalorder %s43, 0
      %s45 = scalar_select %p44, %s43, 0
      %p46 = scmp.lt.s32.totalorder %s45, 0
      %s47 = scalar_select %p46, %s45, 0
      %s48 = smul.addr %s47, 4
      %s49 = scalar_lea.vmem %s2, %s48
      %s50 = sadd.s32 0, 0
      %p51 = scmp.lt.s32.totalorder %s50, 0
      %s52 = scalar_select %p51, %s50, 0
    $region13: #{tpu_custom_call.1} parent=1 // pred_fallthru
      _
    // Predicated region
    $region14: #{tpu_custom_call.1} parent=1 // pred_check
      _
    $region15: #{tpu_custom_call.1} parent=1 // pred_check_branch
      %54 = sbr.rel (0) target = $region17
    $region16: #{tpu_custom_call.1} parent=1 // pred_region
      %55 = dma.done [#allocation4], 64
    $region17: #{tpu_custom_call.1} parent=1 // pred_fallthru
      _
    // Predicated region
    $region18: #{tpu_custom_call.1} parent=1 // pred_check
      _
    $region19: #{tpu_custom_call.1} parent=1 // pred_check_branch
      %57 = sbr.rel (0) target = $region21
    $region20: #{tpu_custom_call.1} parent=1 // pred_region
      %58 = dma.done [#allocation7], 64
    $region21: #{tpu_custom_call.1} parent=1 // pred_fallthru
      _
    %s59 = sadd.s32 0, 0
    %p60 = scmp.lt.s32.totalorder %s59, 0
    %s61 = scalar_select %p60, %s59, 0
    %p62 = scmp.lt.s32.totalorder %s61, 0
    %s63 = scalar_select %p62, %s61, 0
    %s64 = smul.addr %s63, 4
    %s65 = scalar_lea.vmem %s2, %s64
    %s66 = sadd.s32 0, 0
    %p67 = scmp.lt.s32.totalorder %s66, 0
    %s68 = scalar_select %p67, %s66, 0
    %s69 = sadd.s32 0, 0
    %p70 = scmp.lt.s32.totalorder %s69, 0
    %s71 = scalar_select %p70, %s69, 0
    %s72 = sadd.s32 0, 0
    %p73 = scmp.lt.s32.totalorder %s72, 0
    %s74 = scalar_select %p73, %s72, 0
    %p75 = scmp.lt.s32.totalorder %s74, 0
    %s76 = scalar_select %p75, %s74, 0
    %s77 = smul.addr %s76, 4
    %s78 = scalar_lea.vmem %s2, %s77
    %s79 = sadd.s32 0, 0
    %p80 = scmp.lt.s32.totalorder %s79, 0
    %s81 = scalar_select %p80, %s79, 0
    %p82 = scmp.eq.s32.totalorder 0, 0
    // Predicated region
    $region22: #{tpu_custom_call.1} parent=1 // pred_check
      %p83 = pneg %p82
    $region23: #{tpu_custom_call.1} parent=1 // pred_check_branch
      %85 = sbr.rel (%p83) target = $region25
    $region24: #{tpu_custom_call.1} parent=1 // pred_region
      %vm86 = vcmask 0
      %87 = vst.msk [vmem:[#allocation2] sm:$0x1] %vm86, 0.0
    $region25: #{tpu_custom_call.1} parent=1 // pred_fallthru
      _
    %v88 = vld [vmem:[#allocation3] sm:$0xf]
    %v89 = vunpack.c.l.bf16 %v88
    %v90 = vld [vmem:[#allocation6] sm:$0xf]
    %v91 = vunpack.c.l.bf16 %v90
    %v92 = vld [vmem:[%s78] sm:$0xf]
    %v93 = vunpack.c.l.bf16 %v92
    %v94 = vmul.f32 %v89, %v91
    %95 = vadd.xlane.f32.xlu0 %v94
    %v96 = vpop.xlane.xlu0 %95
    %v97 = vmul.f32 %v89, %v93
    %98 = vadd.xlane.f32.xlu0 %v97
    %v99 = vpop.xlane.xlu0 %98
    %v100 = vsub.f32 0.0, %v96
    %v101 = vand.u32 2147483647, %v99
    %v102 = vadd.f32 %v100, %v101
    %v103 = vadd.f32 %v102, 5.0
    %v104 = vmax.f32 %v103, 0.0
    %s105 = sadd.s32 0, 0
    %s106 = smul.u32 %s105, 8
    %v107 = vlaneseq
    %v108 = vshrl.u32 %v107, 7
    %v109 = vstv %s106
    %v110 = vadd.s32 %v108, %v109
    %vm111 = vcmp.lt.s32.totalorder %v110, 8
    %v112 = vsel %vm111, %v104, 0.0
    %v113 = vld [vmem:[#allocation2] sm:$0x1]
    %v114 = vrot.slane %v112, 4
    %v115 = vadd.f32 %v112, %v114
    %v116 = vrot.slane %v115, 2
    %v117 = vadd.f32 %v115, %v116
    %v118 = vrot.slane %v117, 1
    %v119 = vadd.f32 %v117, %v118
    %v120 = vadd.f32 %v113, %v119
    %vm121 = vcmask 0
    %122 = vst.msk [vmem:[#allocation2] sm:$0x1] %vm121, %v120
    // Predicated region
    $region26: #{tpu_custom_call.1} parent=1 // pred_check
      %p123 = pneg %p82
    $region27: #{tpu_custom_call.1} parent=1 // pred_check_branch
      %125 = sbr.rel (%p123) target = $region29
    $region28: #{tpu_custom_call.1} parent=1 // pred_region
      %v126 = vld [vmem:[#allocation2] sm:$0x1]
      %v128 = vlaneseq
      %v129 = vshrl.u32 %v128, 7
      %v130 = vsub.s32 0, %v129
      %v131 = vrot.slane %v126, %v130
      %132 = vset.pattern.permute.xlu0 0
      %133 = vperm.xlu0 %132, %v131
      %v134 = vpop.permute.xlu0 %133
      %136 = vst [vmem:[#allocation8] sm:$0xff] %v134
    $region29: #{tpu_custom_call.1} parent=1 // pred_fallthru
      _
    // Predicated region
    $region30: #{tpu_custom_call.1} parent=1 // pred_check
      _
    $region31: #{tpu_custom_call.1} parent=1 // pred_check_branch
      %138 = sbr.rel (0) target = $region33
    $region32: #{tpu_custom_call.1} parent=1 // pred_region
      %s140 = ssub.s32 128, 128
      %141 = vsyncadd [#allocation5], %s140
      %s143 = sshll.u32 [#allocation8], 4
      %s144 = int_to_ptr.vmem [resolvable:$true] %s143
      %146 = dma.vmem_to_hbm [thread:$0]  %s144, 128, %s3, [#allocation5]
    $region33: #{tpu_custom_call.1} parent=1 // pred_fallthru
      _
    // Predicated region
    $region34: #{tpu_custom_call.1} parent=1 // pred_check
      _
    $region35: #{tpu_custom_call.1} parent=1 // pred_check_branch
      %148 = sbr.rel (0) target = $region37
    $region36: #{tpu_custom_call.1} parent=1 // pred_region
      %149 = dma.done [#allocation5], 128
    $region37: #{tpu_custom_call.1} parent=1 // pred_fallthru
      _
    %150 = vsyncpa [#allocation4], 1
    %151 = vsyncpa [#allocation7], 1
    %152 = vsyncpa [#allocation5], 1

</llo_original>
